<compile_context>
chip_gen: v6e
topology: v6e:2x2x1
jax: 0.10.0
libtpu: 0.0.40
codegen_flags: <defaults>
</compile_context>

<pallas_src>
import functools

import numpy as np
import jax
import jax.numpy as jnp
from jax.experimental import pallas as pl
from jax.experimental.pallas import tpu as pltpu


# ----------------------------------------------------------------------------
# helpers
# ----------------------------------------------------------------------------
def _f_p(x, neg_slope=0.01):
    # f_p = LeakyReLU(clamp(x, -1, 1)), negative_slope = 0.01 (torch default)
    c = jnp.clip(x, -1.0, 1.0)
    return jnp.where(c >= 0, c, neg_slope * c)


def _pick_batch_tile(batch, per_batch_bytes, budget_bytes=2 << 20):
    """Largest divisor of `batch` whose M-block stays under `budget_bytes`."""
    best = 1
    for tb in range(1, batch + 1):
        if batch % tb == 0 and tb * per_batch_bytes <= budget_bytes:
            best = tb
    return best


# ----------------------------------------------------------------------------
# Kernel 1: Entor2Hipp + RetriveMemory attractor (fused)
# ----------------------------------------------------------------------------
def _attractor_kernel(g_ref, w_ref, m_ref, h_ref, *, kappa, thresholds, neg_slope):
    # g_ref: (TB, G)   concat of all g streams
    # w_ref: (G, P)    fused W_g_downsample @ W_repeat (block diagonal, static)
    # m_ref: (TB, P, P) memory M_{t-1}
    # h_ref: (TB, P)   output (concat of p streams)
    g = g_ref[...]
    w = w_ref[...]
    m = m_ref[...]
    tb, p_dim = h_ref.shape

    # Entor2Hipp for every stream in one small matmul, then f_p.
    h = jnp.dot(g, w, preferred_element_type=jnp.float32)
    h = _f_p(h, neg_slope)

    # retrieve_it_mask[tau] == (lane < thresholds[tau]); generated in-kernel.
    lane = jax.lax.broadcasted_iota(jnp.int32, (tb, p_dim), 1)

    for thresh in thresholds:  # n_iteration is a small static constant
        # mv[b, q] = sum_p h[b, p] * M[b, p, q]   (VPU multiply + sublane reduce)
        mv = jnp.sum(h[:, :, None] * m, axis=1)
        upd = _f_p(kappa * h + mv, neg_slope)
        # (1 - mask)*h + mask*upd  with a {0,1} mask  ==  where(mask, upd, h)
        h = jnp.where(lane < thresh, upd, h)

    h_ref[...] = h


# ----------------------------------------------------------------------------
# Kernel 2: SensoryPrediction (W_tile^T sum + 2-layer MLP with ELU), per stream
# ----------------------------------------------------------------------------
def _sensory_kernel(p_ref, wt_ref, w1_ref, b1_ref, w2_ref, b2_ref, out_ref, *, wx, bx):
    # p_ref:  (TB, p_dim)      wt_ref: (p_dim, xf)
    # w1_ref: (xf, hidden)     b1_ref: (1, hidden)
    # w2_ref: (hidden, x_dim)  b2_ref: (1, x_dim)
    p = p_ref[...]
    v = wx * jnp.dot(p, wt_ref[...], preferred_element_type=jnp.float32) + bx
    hid = jnp.dot(v, w1_ref[...], preferred_element_type=jnp.float32) + b1_ref[...]
    hid = jnp.where(hid > 0, hid, jnp.exp(hid) - 1.0)  # ELU (alpha = 1)
    out_ref[...] = (jnp.dot(hid, w2_ref[...], preferred_element_type=jnp.float32)
                    + b2_ref[...])


# ----------------------------------------------------------------------------
# Parameter construction (module "__init__" equivalent, numpy/JAX glue)
# ----------------------------------------------------------------------------
def build_generator_params(n_stream, g_dimension_list, g_downsampled_dimension_list,
                           xf_dimension_list, x_dimension, key):
    p_dims = [g_downsampled_dimension_list[i] * xf_dimension_list[i]
              for i in range(n_stream)]
    G = int(sum(g_dimension_list))
    P = int(sum(p_dims))

    # Fused Entor2Hipp weight: block-diagonal [G, P] with block_i =
    # W_g_downsample_i @ W_repeat_i  (exact 0/1 entries).
    W_e2h = np.zeros((G, P), np.float32)
    W_tileT = []
    g_off = p_off = 0
    for i in range(n_stream):
        gd = g_dimension_list[i]
        gdd = g_downsampled_dimension_list[i]
        xf = xf_dimension_list[i]
        W_repeat = np.kron(np.eye(gdd), np.ones((1, xf))).astype(np.float32)   # [gdd, gdd*xf]
        W_gdown = np.concatenate(
            [np.eye(gdd), np.zeros((gd - gdd, gdd))], axis=0).astype(np.float32)  # [gd, gdd]
        W_e2h[g_off:g_off + gd, p_off:p_off + gdd * xf] = W_gdown @ W_repeat
        W_tile = np.kron(np.ones((1, gdd)), np.eye(xf)).astype(np.float32)     # [xf, gdd*xf]
        W_tileT.append(jnp.asarray(W_tile.T))                                  # [p_dim_i, xf]
        g_off += gd
        p_off += gdd * xf

    # Per-stream MLP weights (xavier-normal-like), biases zero (as in torch init).
    keys = jax.random.split(key, 2 * n_stream)
    W1, b1, W2, b2 = [], [], [], []
    for i in range(n_stream):
        xf = xf_dimension_list[i]
        hidden = 20 * xf
        s1 = float((2.0 / (xf + hidden)) ** 0.5)
        s2 = float((2.0 / (hidden + x_dimension)) ** 0.5)
        W1.append(s1 * jax.random.normal(keys[2 * i], (xf, hidden), jnp.float32))
        b1.append(jnp.zeros((1, hidden), jnp.float32))
        W2.append(s2 * jax.random.normal(keys[2 * i + 1], (hidden, x_dimension), jnp.float32))
        b2.append(jnp.zeros((1, x_dimension), jnp.float32))

    return {"W_e2h": jnp.asarray(W_e2h), "W_tileT": W_tileT,
            "W1": W1, "b1": b1, "W2": W2, "b2": b2,
            "wx": 1.0, "bx": 0.0,                       # nn.Parameter init values
            "p_dimension_list": p_dims}


# ----------------------------------------------------------------------------
# Generator forward (Pallas)
# ----------------------------------------------------------------------------
def generator_forward(g_list, M, params, *, n_stream, kappa, n_iteration,
                      vmem_block_budget_bytes=2 << 20):
    p_dims = params["p_dimension_list"]
    P = int(sum(p_dims))
    g_cat = jnp.concatenate(g_list, axis=1).astype(jnp.float32)   # [B, G]
    B, G = g_cat.shape
    M = M.astype(jnp.float32)

    # retrieve_it_mask thresholds (static, same python expression as the module)
    thresholds = tuple(int(sum(p_dims[:n_stream - tau])) for tau in range(n_iteration))

    # Batch tile: multiple batch elements per grid step so the M block is
    # multi-KB/MB instead of one matrix per step (mem-bound kernel).
    TB = _pick_batch_tile(B, per_batch_bytes=P * P * 4,
                          budget_bytes=vmem_block_budget_bytes)

    attractor = functools.partial(_attractor_kernel, kappa=float(kappa),
                                  thresholds=thresholds, neg_slope=0.01)
    h = pl.pallas_call(
        attractor,
        out_shape=jax.ShapeDtypeStruct((B, P), jnp.float32),
        grid_spec=pltpu.PrefetchScalarGridSpec(
            num_scalar_prefetch=0,
            grid=(B // TB,),
            in_specs=[
                pl.BlockSpec((TB, G), lambda b: (b, 0)),        # concat(g streams)
                pl.BlockSpec((G, P), lambda b: (0, 0)),         # fused Entor2Hipp weight
                pl.BlockSpec((TB, P, P), lambda b: (b, 0, 0)),  # M_{t-1}
            ],
            out_specs=pl.BlockSpec((TB, P), lambda b: (b, 0)),
        ),
        compiler_params=pltpu.CompilerParams(
            dimension_semantics=("parallel",)),
    )(g_cat, params["W_e2h"], M)

    # split h into per-stream p (wrapper glue; variable per-stream widths)
    n_p = np.cumsum([0] + list(p_dims))
    p_list = [h[:, int(n_p[i]):int(n_p[i + 1])] for i in range(n_stream)]

    x_logits = []
    for i in range(n_stream):
        p_dim_i = int(p_dims[i])
        xf = int(params["W_tileT"][i].shape[1])
        hidden = int(params["W1"][i].shape[1])
        x_dim = int(params["W2"][i].shape[1])
        sens = functools.partial(_sensory_kernel,
                                 wx=float(params["wx"]), bx=float(params["bx"]))
        logits = pl.pallas_call(
            sens,
            out_shape=jax.ShapeDtypeStruct((B, x_dim), jnp.float32),
            grid_spec=pltpu.PrefetchScalarGridSpec(
                num_scalar_prefetch=0,
                grid=(B // TB,),
                in_specs=[
                    pl.BlockSpec((TB, p_dim_i), lambda b: (b, 0)),
                    pl.BlockSpec((p_dim_i, xf), lambda b: (0, 0)),
                    pl.BlockSpec((xf, hidden), lambda b: (0, 0)),
                    pl.BlockSpec((1, hidden), lambda b: (0, 0)),
                    pl.BlockSpec((hidden, x_dim), lambda b: (0, 0)),
                    pl.BlockSpec((1, x_dim), lambda b: (0, 0)),
                ],
                out_specs=pl.BlockSpec((TB, x_dim), lambda b: (b, 0)),
            ),
            compiler_params=pltpu.CompilerParams(
                dimension_semantics=("parallel",)),
        )(p_list[i], params["W_tileT"][i], params["W1"][i], params["b1"][i],
          params["W2"][i], params["b2"][i])
        x_logits.append(logits)

    return x_logits, p_list


# ----------------------------------------------------------------------------
# Pure-JAX reference (mirrors the PyTorch module)
# ----------------------------------------------------------------------------
def generator_ref(g_list, M, params, *, n_stream, g_downsampled_dimension_list,
                  xf_dimension_list, kappa, n_iteration):
    p_dims = params["p_dimension_list"]
    P = int(sum(p_dims))
    # Entor2Hipp: downsample-select then repeat each element xf times
    g_ = [jnp.repeat(g_list[i][:, :g_downsampled_dimension_list[i]],
                     xf_dimension_list[i], axis=1) for i in range(n_stream)]
    h = _f_p(jnp.concatenate(g_, axis=1).astype(jnp.float32))
    for tau in range(n_iteration):
        thresh = int(sum(p_dims[:n_stream - tau]))
        mask = (jnp.arange(P) < thresh).astype(jnp.float32)
        mv = jnp.einsum('bp,bpq->bq', h, M.astype(jnp.float32))
        h = (1.0 - mask) * h + mask * _f_p(kappa * h + mv)
    n_p = np.cumsum([0] + list(p_dims))
    p_list = [h[:, int(n_p[i]):int(n_p[i + 1])] for i in range(n_stream)]
    logits = []
    for i in range(n_stream):
        v = params["wx"] * (p_list[i] @ params["W_tileT"][i]) + params["bx"]
        hid = jax.nn.elu(v @ params["W1"][i] + params["b1"][i])
        logits.append(hid @ params["W2"][i] + params["b2"][i])
    return logits, p_list


if __name__ == "__main__":
    # Small shapes consistent with the module.
    n_stream = 2
    g_dimension_list = [8, 6]
    g_downsampled_dimension_list = [4, 3]
    xf_dimension_list = [4, 4]
    x_dimension = 10
    kappa = 0.8
    n_iteration = 2
    batch = 2

    key = jax.random.PRNGKey(0)
    k_param, k_g0, k_g1, k_M = jax.random.split(key, 4)
    params = build_generator_params(n_stream, g_dimension_list,
                                    g_downsampled_dimension_list,
                                    xf_dimension_list, x_dimension, k_param)
    P = int(sum(params["p_dimension_list"]))

    g_list = [jax.random.normal(k_g0, (batch, g_dimension_list[0]), jnp.float32),
              jax.random.normal(k_g1, (batch, g_dimension_list[1]), jnp.float32)]
    M = 0.05 * jax.random.normal(k_M, (batch, P, P), jnp.float32)

    x_logits, p_list = generator_forward(g_list, M, params, n_stream=n_stream,
                                         kappa=kappa, n_iteration=n_iteration)
    jax.block_until_ready((x_logits, p_list))

    ref_logits, ref_p = generator_ref(
        g_list, M, params, n_stream=n_stream,
        g_downsampled_dimension_list=g_downsampled_dimension_list,
        xf_dimension_list=xf_dimension_list, kappa=kappa, n_iteration=n_iteration)

    for i in range(n_stream):
        np.testing.assert_allclose(np.asarray(p_list[i]), np.asarray(ref_p[i]),
                                   rtol=1e-4, atol=1e-5)
        np.testing.assert_allclose(np.asarray(x_logits[i]), np.asarray(ref_logits[i]),
                                   rtol=1e-4, atol=1e-5)

    print("KERNEL_OK")
</pallas_src>

<mosaic_0001>
module attributes {stable_mosaic.version = 11 : i64} {
  func.func @_attractor_kernel(%arg0: i32, %arg1: memref<2x14xf32, #tpu.memory_space<vmem>>, %arg2: memref<14x28xf32, #tpu.memory_space<vmem>>, %arg3: memref<2x28x28xf32, #tpu.memory_space<vmem>>, %arg4: memref<2x28xf32, #tpu.memory_space<vmem>>) attributes {dimension_semantics = [#tpu.dimension_semantics<parallel>], iteration_bounds = array<i64: 1>, scalar_prefetch = 0 : i64, scratch_operands = 0 : i64, tpu.core_type = #tpu.core_type<tc>, window_params = [{transform_indices = @transform_0, window_bounds = array<i64: 2, 14>}, {pipeline_mode = #tpu.pipeline_mode<synchronous>, transform_indices = @transform_1, window_bounds = array<i64: 14, 28>}, {transform_indices = @transform_2, window_bounds = array<i64: 2, 28, 28>}, {transform_indices = @transform_3, window_bounds = array<i64: 2, 28>}]} {
    %c0 = arith.constant 0 : index
    %c0_0 = arith.constant 0 : index
    %0 = vector.load %arg1[%c0, %c0_0] : memref<2x14xf32, #tpu.memory_space<vmem>>, vector<2x14xf32>
    %c0_1 = arith.constant 0 : index
    %c0_2 = arith.constant 0 : index
    %1 = vector.load %arg2[%c0_1, %c0_2] : memref<14x28xf32, #tpu.memory_space<vmem>>, vector<14x28xf32>
    %c0_3 = arith.constant 0 : index
    %c0_4 = arith.constant 0 : index
    %c0_5 = arith.constant 0 : index
    %2 = vector.load %arg3[%c0_3, %c0_4, %c0_5] : memref<2x28x28xf32, #tpu.memory_space<vmem>>, vector<2x28x28xf32>
    %cst = arith.constant dense<0.000000e+00> : vector<2x28xf32>
    %3 = tpu.matmul %0, %1, %cst {dimension_numbers = #tpu.dot_dimension_numbers<[1], [0], [0], [1], [0, 0, 1, 1], [], []>} : vector<2x14xf32>, vector<14x28xf32>, vector<2x28xf32> -> vector<2x28xf32>
    %cst_6 = arith.constant -1.000000e+00 : f32
    %cst_7 = arith.constant 1.000000e+00 : f32
    %4 = vector.broadcast %cst_6 : f32 to vector<2x28xf32>
    %5 = arith.maximumf %4, %3 : vector<2x28xf32>
    %6 = vector.broadcast %cst_7 : f32 to vector<2x28xf32>
    %7 = arith.minimumf %6, %5 : vector<2x28xf32>
    %cst_8 = arith.constant 0.000000e+00 : f32
    %8 = vector.broadcast %cst_8 : f32 to vector<2x28xf32>
    %9 = arith.cmpf oge, %7, %8 : vector<2x28xf32>
    %cst_9 = arith.constant 0.00999999977 : f32
    %10 = vector.broadcast %cst_9 : f32 to vector<2x28xf32>
    %11 = arith.mulf %10, %7 : vector<2x28xf32>
    %12 = arith.select %9, %7, %11 : vector<2x28xi1>, vector<2x28xf32>
    %13 = tpu.iota {dimensions = array<i32: 1>} : vector<2x28xi32>
    %14 = vector.shape_cast %12 : vector<2x28xf32> to vector<2x28x1xf32>
    %15 = vector.broadcast %14 : vector<2x28x1xf32> to vector<2x28x28xf32>
    %16 = arith.mulf %15, %2 : vector<2x28x28xf32>
    %cst_10 = arith.constant dense<0.000000e+00> : vector<2x28xf32>
    %17 = vector.multi_reduction <add>, %16, %cst_10 [1] : vector<2x28x28xf32> to vector<2x28xf32>
    %cst_11 = arith.constant 8.000000e-01 : f32
    %18 = vector.broadcast %cst_11 : f32 to vector<2x28xf32>
    %19 = arith.mulf %18, %12 : vector<2x28xf32>
    %20 = arith.addf %19, %17 : vector<2x28xf32>
    %cst_12 = arith.constant -1.000000e+00 : f32
    %cst_13 = arith.constant 1.000000e+00 : f32
    %21 = vector.broadcast %cst_12 : f32 to vector<2x28xf32>
    %22 = arith.maximumf %21, %20 : vector<2x28xf32>
    %23 = vector.broadcast %cst_13 : f32 to vector<2x28xf32>
    %24 = arith.minimumf %23, %22 : vector<2x28xf32>
    %cst_14 = arith.constant 0.000000e+00 : f32
    %25 = vector.broadcast %cst_14 : f32 to vector<2x28xf32>
    %26 = arith.cmpf oge, %24, %25 : vector<2x28xf32>
    %cst_15 = arith.constant 0.00999999977 : f32
    %27 = vector.broadcast %cst_15 : f32 to vector<2x28xf32>
    %28 = arith.mulf %27, %24 : vector<2x28xf32>
    %29 = arith.select %26, %24, %28 : vector<2x28xi1>, vector<2x28xf32>
    %c28_i32 = arith.constant 28 : i32
    %30 = vector.broadcast %c28_i32 : i32 to vector<2x28xi32>
    %31 = arith.cmpi slt, %13, %30 : vector<2x28xi32>
    %32 = arith.select %31, %29, %12 : vector<2x28xi1>, vector<2x28xf32>
    %33 = vector.shape_cast %32 : vector<2x28xf32> to vector<2x28x1xf32>
    %34 = vector.broadcast %33 : vector<2x28x1xf32> to vector<2x28x28xf32>
    %35 = arith.mulf %34, %2 : vector<2x28x28xf32>
    %cst_16 = arith.constant dense<0.000000e+00> : vector<2x28xf32>
    %36 = vector.multi_reduction <add>, %35, %cst_16 [1] : vector<2x28x28xf32> to vector<2x28xf32>
    %cst_17 = arith.constant 8.000000e-01 : f32
    %37 = vector.broadcast %cst_17 : f32 to vector<2x28xf32>
    %38 = arith.mulf %37, %32 : vector<2x28xf32>
    %39 = arith.addf %38, %36 : vector<2x28xf32>
    %cst_18 = arith.constant -1.000000e+00 : f32
    %cst_19 = arith.constant 1.000000e+00 : f32
    %40 = vector.broadcast %cst_18 : f32 to vector<2x28xf32>
    %41 = arith.maximumf %40, %39 : vector<2x28xf32>
    %42 = vector.broadcast %cst_19 : f32 to vector<2x28xf32>
    %43 = arith.minimumf %42, %41 : vector<2x28xf32>
    %cst_20 = arith.constant 0.000000e+00 : f32
    %44 = vector.broadcast %cst_20 : f32 to vector<2x28xf32>
    %45 = arith.cmpf oge, %43, %44 : vector<2x28xf32>
    %cst_21 = arith.constant 0.00999999977 : f32
    %46 = vector.broadcast %cst_21 : f32 to vector<2x28xf32>
    %47 = arith.mulf %46, %43 : vector<2x28xf32>
    %48 = arith.select %45, %43, %47 : vector<2x28xi1>, vector<2x28xf32>
    %c16_i32 = arith.constant 16 : i32
    %49 = vector.broadcast %c16_i32 : i32 to vector<2x28xi32>
    %50 = arith.cmpi slt, %13, %49 : vector<2x28xi32>
    %51 = arith.select %50, %48, %32 : vector<2x28xi1>, vector<2x28xf32>
    %c0_22 = arith.constant 0 : index
    %c0_23 = arith.constant 0 : index
    %52 = vector.load %arg4[%c0_22, %c0_23] : memref<2x28xf32, #tpu.memory_space<vmem>>, vector<2x28xf32>
    tpu.vector_store %arg4[%c0_22, %c0_23], %51 {strides = array<i32>} : memref<2x28xf32, #tpu.memory_space<vmem>>, vector<2x28xf32>,
    return
  }
  func.func @transform_0(%arg0: i32) -> (i32, i32) {
    %c0_i32 = arith.constant 0 : i32
    %c0_i32_0 = arith.constant 0 : i32
    return %arg0, %c0_i32 : i32, i32
  }
  func.func @transform_1(%arg0: i32) -> (i32, i32) {
    %c0_i32 = arith.constant 0 : i32
    %c0_i32_0 = arith.constant 0 : i32
    %c0_i32_1 = arith.constant 0 : i32
    return %c0_i32, %c0_i32_0 : i32, i32
  }
  func.func @transform_2(%arg0: i32) -> (i32, i32, i32) {
    %c0_i32 = arith.constant 0 : i32
    %c0_i32_0 = arith.constant 0 : i32
    %c0_i32_1 = arith.constant 0 : i32
    return %arg0, %c0_i32, %c0_i32_0 : i32, i32, i32
  }
  func.func @transform_3(%arg0: i32) -> (i32, i32) {
    %c0_i32 = arith.constant 0 : i32
    %c0_i32_0 = arith.constant 0 : i32
    return %arg0, %c0_i32 : i32, i32
  }
}

</mosaic_0001>

<llo_original>
// kernel: tpu_custom_call.1
$region0: #{tpu_custom_call.1}
  #allocation0 [shape = 'u32[]', space=smem, size = 0x4, offset = 0x4, fixed_abs, tag = 'smem constant byte address 0x4 - core index']
  #allocation1 [shape = 'u32[144,128]{1,0:T(1,128)}', space=vmem, size = 0x12000, scoped, tag = 'internal scratch']
  %s0 = inlined_call_operand.vmem [shape: f32[2,14], index: 0, kind: input, shape index: {}]
  %s1 = inlined_call_operand.vmem [shape: f32[14,28], index: 1, kind: input, shape index: {}]
  %s2 = inlined_call_operand.vmem [shape: f32[2,28,28], index: 2, kind: input, shape index: {}]
  %s3 = inlined_call_operand.hbm [shape: f32[2,28], index: 3, kind: output, shape index: {}]
  %s4 = sld [smem:[#allocation0]]
  $region22: #{tpu_custom_call.1} parent=0
    _
  %s6 = ssub.s32 1, %s4
  %s7 = scalar_select 0, %s6, %s4
  $region1: #{tpu_custom_call.1} parent=0
    #allocation2 [shape = 'u8[1024]{0}', space=vmem, size = 0x400, scoped, tag = 'output window, operand 0, single buffered']
    #allocation3 [shape = 's32[1]{0}', space=sflag, size = 0x4, scoped, tag = 'scoped memory for tpu_custom_call.1']
    %8 = vsyncpa [#allocation3], 0
    // Predicated region
    $region2: #{tpu_custom_call.1} parent=1 // pred_check
      _
    $region3: #{tpu_custom_call.1} parent=1 // pred_check_branch
      %10 = sbr.rel (0) target = $region5
    $region4: #{tpu_custom_call.1} parent=1 // pred_region
      _
    $region5: #{tpu_custom_call.1} parent=1 // pred_fallthru
      _
    // Predicated region
    $region6: #{tpu_custom_call.1} parent=1 // pred_check
      _
    $region7: #{tpu_custom_call.1} parent=1 // pred_check_branch
      %12 = sbr.rel (0) target = $region9
    $region8: #{tpu_custom_call.1} parent=1 // pred_region
      _
    $region9: #{tpu_custom_call.1} parent=1 // pred_fallthru
      _
    // Predicated region
    $region10: #{tpu_custom_call.1} parent=1 // pred_check
      _
    $region11: #{tpu_custom_call.1} parent=1 // pred_check_branch
      %14 = sbr.rel (0) target = $region13
    $region12: #{tpu_custom_call.1} parent=1 // pred_region
      _
    $region13: #{tpu_custom_call.1} parent=1 // pred_fallthru
      _
    %v15 = vld [vmem:[%s0] sm:$0x3]
    %v16 = vld [vmem:[%s1] sm:$0xff]
    %v17 = vld [vmem:[%s1 + $0x8] sm:$0x3f]
    %v18 = vld [vmem:[%s2] sm:$0xff]
    %v19 = vld [vmem:[%s2 + $0x8] sm:$0xff]
    %v20 = vld [vmem:[%s2 + $0x10] sm:$0xff]
    %v21 = vld [vmem:[%s2 + $0x18] sm:$0xf]
    %v22 = vld [vmem:[%s2 + $0x20] sm:$0xff]
    %v23 = vld [vmem:[%s2 + $0x28] sm:$0xff]
    %v24 = vld [vmem:[%s2 + $0x30] sm:$0xff]
    %v25 = vld [vmem:[%s2 + $0x38] sm:$0xf]
    %vm26 = vcmask 113664
    %v28 = vsel %vm26, %v15, 0
    %vm30 = vcmask 1045504
    %v32 = vsel %vm30, %v17, 0
    %34 = vmatprep.subr.mxu0 0.0
    %35 = vmatpush1.msra.mxu0 0.0
    %36 = vmatprep.subr.mxu0 0.0
    %37 = vmatpush1.msra.mxu0 0.0
    %38 = vmatprep.subr.mxu0 0.0
    %39 = vmatpush1.msra.mxu0 0.0
    %40 = vmatprep.subr.mxu0 0.0
    %41 = vmatpush1.msra.mxu0 0.0
    %42 = vmatprep.subr.mxu0 0.0
    %43 = vmatpush1.msra.mxu0 0.0
    %44 = vmatprep.subr.mxu0 0.0
    %45 = vmatpush1.msra.mxu0 0.0
    %46 = vmatprep.subr.mxu0 0.0
    %47 = vmatpush1.msra.mxu0 0.0
    %48 = vmatprep.subr.mxu0 0.0
    %49 = vmatpush1.msra.mxu0 0.0
    %50 = vmatprep.subr.mxu0 0.0
    %51 = vmatpush1.msra.mxu0 0.0
    %52 = vmatprep.subr.mxu0 0.0
    %53 = vmatpush1.msra.mxu0 0.0
    %54 = vmatprep.subr.mxu0 0.0
    %55 = vmatpush1.msra.mxu0 0.0
    %56 = vmatprep.subr.mxu0 0.0
    %57 = vmatpush1.msra.mxu0 0.0
    %58 = vmatprep.subr.mxu0 0.0
    %59 = vmatpush1.msra.mxu0 0.0
    %60 = vmatprep.subr.mxu0 0.0
    %61 = vmatpush1.msra.mxu0 0.0
    %62 = vmatprep.subr.mxu0 0.0
    %63 = vmatpush1.msra.mxu0 %v32
    %64 = vmatprep.subr.mxu0 0.0
    %65 = vmatpush1.msra.mxu0 %v16
    %66 = vmatprep.subr.mxu0 0.0
    %67 = vmatpush2.msra.mxu0 0.0
    %68 = vmatprep.subr.mxu0 0.0
    %69 = vmatpush2.msra.mxu0 0.0
    %70 = vmatprep.subr.mxu0 0.0
    %71 = vmatpush2.msra.mxu0 0.0
    %72 = vmatprep.subr.mxu0 0.0
    %73 = vmatpush2.msra.mxu0 0.0
    %74 = vmatprep.subr.mxu0 0.0
    %75 = vmatpush2.msra.mxu0 0.0
    %76 = vmatprep.subr.mxu0 0.0
    %77 = vmatpush2.msra.mxu0 0.0
    %78 = vmatprep.subr.mxu0 0.0
    %79 = vmatpush2.msra.mxu0 0.0
    %80 = vmatprep.subr.mxu0 0.0
    %81 = vmatpush2.msra.mxu0 0.0
    %82 = vmatprep.subr.mxu0 0.0
    %83 = vmatpush2.msra.mxu0 0.0
    %84 = vmatprep.subr.mxu0 0.0
    %85 = vmatpush2.msra.mxu0 0.0
    %86 = vmatprep.subr.mxu0 0.0
    %87 = vmatpush2.msra.mxu0 0.0
    %88 = vmatprep.subr.mxu0 0.0
    %89 = vmatpush2.msra.mxu0 0.0
    %90 = vmatprep.subr.mxu0 0.0
    %91 = vmatpush2.msra.mxu0 0.0
    %92 = vmatprep.subr.mxu0 0.0
    %93 = vmatpush2.msra.mxu0 0.0
    %94 = vmatprep.subr.mxu0 0.0
    %95 = vmatpush2.msra.mxu0 0.0
    %96 = vmatprep.subr.mxu0 0.0
    %97 = vmatpush2.msra.mxu0 0.0
    %98 = vmatprep.mubr.f32.mxu0 0.0
    %99 = vmatmul.mubr.f32.gmra.mxu0 %v28
    %v100 = vpop.f32.mrf.mxu0
    %v101 = vadd.f32 0.0, %v100
    %v102 = vpop.f32.mrf.mxu0
    %103 = vdwg.mxu0
    %v104 = vmax.f32 %v101, -1.0
    %v105 = vmin.f32 %v104, 1.0
    %vm106 = vcmp.ge.f32.partialorder %v105, 0.0
    %v107 = vmul.f32 %v105, 0.01
    %v108 = vsel %vm106, %v105, %v107
    %v109 = vlaneseq
    %v110 = vand.u32 %v109, 127
    %v111 = vlaneseq
    %v112 = vshrl.u32 %v111, 7
    %v113 = vsub.s32 0, %v112
    %v114 = vrot.slane %v108, %v113
    %116 = vbcast.lane.b32.xlu0 %v114, 256
    %v117 = vpop.permute.xlu0 %116
    %s119 = sor.u32 256, 8
    %120 = vbcast.lane.b32.xlu0 %v114, %s119
    %v121 = vpop.permute.xlu0 %120
    %s123 = sor.u32 256, 16
    %124 = vbcast.lane.b32.xlu0 %v114, %s123
    %v125 = vpop.permute.xlu0 %124
    %s127 = sor.u32 256, 24
    %128 = vbcast.lane.b32.xlu0 %v114, %s127
    %v129 = vpop.permute.xlu0 %128
    %v130 = vlaneseq
    %v131 = vshrl.u32 %v130, 7
    %v132 = vsub.s32 1, %v131
    %v133 = vrot.slane %v108, %v132
    %135 = vbcast.lane.b32.xlu0 %v133, 256
    %v136 = vpop.permute.xlu0 %135
    %s138 = sor.u32 256, 8
    %139 = vbcast.lane.b32.xlu0 %v133, %s138
    %v140 = vpop.permute.xlu0 %139
    %s142 = sor.u32 256, 16
    %143 = vbcast.lane.b32.xlu0 %v133, %s142
    %v144 = vpop.permute.xlu0 %143
    %s146 = sor.u32 256, 24
    %147 = vbcast.lane.b32.xlu0 %v133, %s146
    %v148 = vpop.permute.xlu0 %147
    %v149 = vmul.f32 %v117, %v18
    %v150 = vmul.f32 %v121, %v19
    %v151 = vmul.f32 %v125, %v20
    %v152 = vmul.f32 %v129, %v21
    %v153 = vmul.f32 %v136, %v22
    %v154 = vmul.f32 %v140, %v23
    %v155 = vmul.f32 %v144, %v24
    %v156 = vmul.f32 %v148, %v25
    %vm157 = vcmask 228352
    %v158 = vsel %vm157, %v149, 0.0
    %v159 = vsel %vm157, %v150, 0.0
    %v160 = vadd.f32 %v158, %v159
    %v161 = vsel %vm157, %v151, 0.0
    %v162 = vadd.f32 %v160, %v161
    %vm163 = vcmask 224256
    %v164 = vsel %vm163, %v152, 0.0
    %v165 = vadd.f32 %v162, %v164
    %v166 = vrot.slane %v165, 4
    %v167 = vadd.f32 %v165, %v166
    %v168 = vrot.slane %v167, 2
    %v169 = vadd.f32 %v167, %v168
    %v170 = vrot.slane %v169, 1
    %v171 = vadd.f32 %v169, %v170
    %v172 = vsel %vm157, %v153, 0.0
    %v173 = vsel %vm157, %v154, 0.0
    %v174 = vadd.f32 %v172, %v173
    %v175 = vsel %vm157, %v155, 0.0
    %v176 = vadd.f32 %v174, %v175
    %v177 = vsel %vm163, %v156, 0.0
    %v178 = vadd.f32 %v176, %v177
    %v179 = vrot.slane %v178, 4
    %v180 = vadd.f32 %v178, %v179
    %v181 = vrot.slane %v180, 2
    %v182 = vadd.f32 %v180, %v181
    %v183 = vrot.slane %v182, 1
    %v184 = vadd.f32 %v182, %v183
    %v185 = vmul.f32 %v108, 0.8
    %vm188 = vcmask 1041409
    %v189 = vsel %vm188, %v184, %v171
    %v191 = vadd.f32 %v185, %v189
    %v192 = vmax.f32 %v191, -1.0
    %v193 = vmin.f32 %v192, 1.0
    %vm194 = vcmp.ge.f32.partialorder %v193, 0.0
    %v195 = vmul.f32 %v193, 0.01
    %v196 = vsel %vm194, %v193, %v195
    %vm197 = vcmp.lt.s32.totalorder %v110, 28
    %v198 = vsel %vm197, %v196, %v108
    %v199 = vlaneseq
    %v200 = vshrl.u32 %v199, 7
    %v201 = vsub.s32 0, %v200
    %v202 = vrot.slane %v198, %v201
    %204 = vbcast.lane.b32.xlu0 %v202, 256
    %v205 = vpop.permute.xlu0 %204
    %s207 = sor.u32 256, 8
    %208 = vbcast.lane.b32.xlu0 %v202, %s207
    %v209 = vpop.permute.xlu0 %208
    %s211 = sor.u32 256, 16
    %212 = vbcast.lane.b32.xlu0 %v202, %s211
    %v213 = vpop.permute.xlu0 %212
    %s215 = sor.u32 256, 24
    %216 = vbcast.lane.b32.xlu0 %v202, %s215
    %v217 = vpop.permute.xlu0 %216
    %v218 = vlaneseq
    %v219 = vshrl.u32 %v218, 7
    %v220 = vsub.s32 1, %v219
    %v221 = vrot.slane %v198, %v220
    %223 = vbcast.lane.b32.xlu0 %v221, 256
    %v224 = vpop.permute.xlu0 %223
    %s226 = sor.u32 256, 8
    %227 = vbcast.lane.b32.xlu0 %v221, %s226
    %v228 = vpop.permute.xlu0 %227
    %s230 = sor.u32 256, 16
    %231 = vbcast.lane.b32.xlu0 %v221, %s230
    %v232 = vpop.permute.xlu0 %231
    %s234 = sor.u32 256, 24
    %235 = vbcast.lane.b32.xlu0 %v221, %s234
    %v236 = vpop.permute.xlu0 %235
    %v237 = vmul.f32 %v205, %v18
    %v238 = vmul.f32 %v209, %v19
    %v239 = vmul.f32 %v213, %v20
    %v240 = vmul.f32 %v217, %v21
    %v241 = vmul.f32 %v224, %v22
    %v242 = vmul.f32 %v228, %v23
    %v243 = vmul.f32 %v232, %v24
    %v244 = vmul.f32 %v236, %v25
    %v245 = vsel %vm157, %v237, 0.0
    %v246 = vsel %vm157, %v238, 0.0
    %v247 = vadd.f32 %v245, %v246
    %v248 = vsel %vm157, %v239, 0.0
    %v249 = vadd.f32 %v247, %v248
    %v250 = vsel %vm163, %v240, 0.0
    %v251 = vadd.f32 %v249, %v250
    %v252 = vrot.slane %v251, 4
    %v253 = vadd.f32 %v251, %v252
    %v254 = vrot.slane %v253, 2
    %v255 = vadd.f32 %v253, %v254
    %v256 = vrot.slane %v255, 1
    %v257 = vadd.f32 %v255, %v256
    %v258 = vsel %vm157, %v241, 0.0
    %v259 = vsel %vm157, %v242, 0.0
    %v260 = vadd.f32 %v258, %v259
    %v261 = vsel %vm157, %v243, 0.0
    %v262 = vadd.f32 %v260, %v261
    %v263 = vsel %vm163, %v244, 0.0
    %v264 = vadd.f32 %v262, %v263
    %v265 = vrot.slane %v264, 4
    %v266 = vadd.f32 %v264, %v265
    %v267 = vrot.slane %v266, 2
    %v268 = vadd.f32 %v266, %v267
    %v269 = vrot.slane %v268, 1
    %v270 = vadd.f32 %v268, %v269
    %v271 = vmul.f32 %v198, 0.8
    %v274 = vsel %vm188, %v270, %v257
    %v276 = vadd.f32 %v271, %v274
    %v277 = vmax.f32 %v276, -1.0
    %v278 = vmin.f32 %v277, 1.0
    %vm279 = vcmp.ge.f32.partialorder %v278, 0.0
    %v280 = vmul.f32 %v278, 0.01
    %v281 = vsel %vm279, %v278, %v280
    %vm282 = vcmp.lt.s32.totalorder %v110, 16
    %v283 = vsel %vm282, %v281, %v198
    %vm284 = vcmask 222208
    %285 = vst.msk [vmem:[#allocation2] sm:$0x3] %vm284, %v283
    // Predicated region
    $region14: #{tpu_custom_call.1} parent=1 // pred_check
      _
    $region15: #{tpu_custom_call.1} parent=1 // pred_check_branch
      %287 = sbr.rel (0) target = $region17
    $region16: #{tpu_custom_call.1} parent=1 // pred_region
      %s289 = ssub.s32 32, 32
      %290 = vsyncadd [#allocation3], %s289
      %s292 = sshll.u32 [#allocation2], 4
      %s293 = int_to_ptr.vmem [resolvable:$true] %s292
      %295 = dma.vmem_to_hbm [thread:$0]  %s293, 32, %s3, [#allocation3]
    $region17: #{tpu_custom_call.1} parent=1 // pred_fallthru
      _
    // Predicated region
    $region18: #{tpu_custom_call.1} parent=1 // pred_check
      _
    $region19: #{tpu_custom_call.1} parent=1 // pred_check_branch
      %297 = sbr.rel (0) target = $region21
    $region20: #{tpu_custom_call.1} parent=1 // pred_region
      %298 = dma.done [#allocation3], 32
    $region21: #{tpu_custom_call.1} parent=1 // pred_fallthru
      _
    %299 = vsyncpa [#allocation3], 1

</llo_original>
